<compile_context>
chip_gen: v7x
topology: tpu7x:2x2x1
jax: 0.10.0
libtpu: 0.0.40
codegen_flags: <defaults>
</compile_context>

<pallas_src>
import math

import jax
import jax.numpy as jnp
from jax.experimental import pallas as pl
from jax.experimental.pallas import tpu as pltpu


def _round_up(a: int, b: int) -> int:
    return ((a + b - 1) // b) * b


def _mlp_kernel(x_ref, w_in_ref, b_in_ref, w_out_ref, b_out_ref, o_ref, acc_ref):
    # x_ref:     (tm, d_in_p)        block (i, 0)   -- constant over j, fetched once
    # w_in_ref:  (d_in_p, tk)        block (0, j)
    # b_in_ref:  (1, tk)      f32    block (0, j)
    # w_out_ref: (tk, d_in_p)        block (j, 0)
    # b_out_ref: (1, d_in_p)  f32    block (0, 0)
    # o_ref:     (tm, d_in_p)        block (i, 0)
    # acc_ref:   (tm, d_in_p) f32    VMEM scratch accumulator
    j = pl.program_id(1)

    @pl.when(j == 0)
    def _init():
        acc_ref[...] = jnp.zeros_like(acc_ref)

    # First matmul chunk: (tm, d_in_p) @ (d_in_p, tk) -> f32 (tm, tk)
    h = jnp.dot(x_ref[...], w_in_ref[...], preferred_element_type=jnp.float32)
    h = h + b_in_ref[...]  # f32 bias add, broadcast over rows

    # gelu(h) = h * sigmoid(1.702 h); approx reciprocal runs on the EUP slot.
    g = h * pl.reciprocal(1.0 + jnp.exp(-1.702 * h), approx=True)

    # Second matmul chunk accumulated in f32: (tm, tk) @ (tk, d_in_p)
    acc_ref[...] += jnp.dot(
        g.astype(w_out_ref.dtype), w_out_ref[...],
        preferred_element_type=jnp.float32)

    @pl.when(j == pl.num_programs(1) - 1)
    def _finalize():
        o_ref[...] = (acc_ref[...] + b_out_ref[...]).astype(o_ref.dtype)


def mlp_pallas(x, w_in, b_in, w_out, b_out, *, tm=256, tk=512, compute_dtype=None):
    """x: (..., d_in) -> (..., d_in).

    tm: row tile (rounded to a multiple of 16, clamped to the problem size).
    tk: d_mlp chunk (rounded to a multiple of 128, clamped to d_mlp).
    compute_dtype: e.g. jnp.bfloat16 to run the matmuls at MXU rate
                   (accumulation and bias adds stay f32).
    """
    d_in, d_mlp = w_in.shape
    out_dtype = x.dtype
    lead_shape = x.shape[:-1]
    m = math.prod(lead_shape) if lead_shape else 1

    x2 = x.reshape(m, d_in)
    if compute_dtype is not None:
        x2 = x2.astype(compute_dtype)
        w_in = w_in.astype(compute_dtype)
        w_out = w_out.astype(compute_dtype)
    b_in2 = b_in.reshape(1, d_mlp).astype(jnp.float32)
    b_out2 = b_out.reshape(1, d_in).astype(jnp.float32)

    # Lane-dense feature dim (unmasked vst): pad d_in up to a multiple of 128.
    d_in_p = _round_up(d_in, 128)
    # Hidden-dim chunk: multiple of 128, no larger than needed; pad d_mlp to a
    # multiple of tk with zeros (zero columns/rows contribute nothing).
    tk = max(128, _round_up(min(tk, d_mlp), 128))
    d_mlp_p = _round_up(d_mlp, tk)
    # Row tile: multiple of 16 (bf16 sublane packing), clamped to problem size.
    tm = max(16, min(_round_up(tm, 16), _round_up(m, 16)))

    if d_in_p != d_in:
        x2 = jnp.pad(x2, ((0, 0), (0, d_in_p - d_in)))
        w_in = jnp.pad(w_in, ((0, d_in_p - d_in), (0, 0)))
        w_out = jnp.pad(w_out, ((0, 0), (0, d_in_p - d_in)))
        b_out2 = jnp.pad(b_out2, ((0, 0), (0, d_in_p - d_in)))
    if d_mlp_p != d_mlp:
        w_in = jnp.pad(w_in, ((0, 0), (0, d_mlp_p - d_mlp)))
        w_out = jnp.pad(w_out, ((0, d_mlp_p - d_mlp), (0, 0)))
        b_in2 = jnp.pad(b_in2, ((0, 0), (0, d_mlp_p - d_mlp)))

    # No row padding: ragged last row-block is handled by the pipeline; the
    # extra rows are garbage that never mixes across rows and is never stored
    # beyond the true extent.
    grid = (pl.cdiv(m, tm), d_mlp_p // tk)

    out = pl.pallas_call(
        _mlp_kernel,
        out_shape=jax.ShapeDtypeStruct((m, d_in_p), out_dtype),
        grid_spec=pltpu.PrefetchScalarGridSpec(
            num_scalar_prefetch=0,
            grid=grid,
            in_specs=[
                pl.BlockSpec((tm, d_in_p), lambda i, j: (i, 0)),
                pl.BlockSpec((d_in_p, tk), lambda i, j: (0, j)),
                pl.BlockSpec((1, tk), lambda i, j: (0, j)),
                pl.BlockSpec((tk, d_in_p), lambda i, j: (j, 0)),
                pl.BlockSpec((1, d_in_p), lambda i, j: (0, 0)),
            ],
            out_specs=pl.BlockSpec((tm, d_in_p), lambda i, j: (i, 0)),
            scratch_shapes=[pltpu.VMEM((tm, d_in_p), jnp.float32)],
        ),
        compiler_params=pltpu.CompilerParams(
            dimension_semantics=("parallel", "arbitrary"),
            vmem_limit_bytes=48 * 1024 * 1024,
        ),
    )(x2, w_in, b_in2, w_out, b_out2)

    out = out[:, :d_in]
    return out.reshape(*lead_shape, d_in)


def mlp_ref(x, w_in, b_in, w_out, b_out):
    """Pure-JAX reference matching the PyTorch forward."""
    h = jnp.einsum("...i,ij->...j", x, w_in) + b_in
    g = h * (1.0 / (1.0 + jnp.exp(-1.702 * h)))
    return jnp.einsum("...m,mo->...o", g, w_out) + b_out


if __name__ == "__main__":
    key = jax.random.PRNGKey(0)
    k_x, k_win, k_wout = jax.random.split(key, 3)

    batch, seq = 2, 8
    d_in, d_mlp = 32, 128

    # Deterministic "torch.randn * sqrt(2/fan_in)"-style init (synthetic).
    w_in = jax.random.normal(k_win, (d_in, d_mlp), jnp.float32) * jnp.sqrt(2.0 / d_in)
    w_out = jax.random.normal(k_wout, (d_mlp, d_in), jnp.float32) * jnp.sqrt(2.0 / d_mlp)
    b_in = jnp.zeros((d_mlp,), jnp.float32)
    b_out = jnp.zeros((d_in,), jnp.float32)

    x = jax.random.normal(k_x, (batch, seq, d_in), jnp.float32)

    ref = mlp_ref(x, w_in, b_in, w_out, b_out)

    # f32-operand path (tolerance covers the EUP approximate reciprocal).
    out = jax.block_until_ready(mlp_pallas(x, w_in, b_in, w_out, b_out))
    assert out.shape == ref.shape == (batch, seq, d_in)
    assert jnp.allclose(out, ref, atol=2e-2, rtol=2e-2), "f32 path mismatch vs reference"

    # bf16-operand path (MXU-rate matmuls, f32 accumulation); compare against a
    # reference computed with the same bf16-cast operands.
    out_bf16 = jax.block_until_ready(
        mlp_pallas(x, w_in, b_in, w_out, b_out, compute_dtype=jnp.bfloat16))
    _c = lambda a: a.astype(jnp.bfloat16).astype(jnp.float32)
    ref_bf16 = mlp_ref(_c(x), _c(w_in), b_in, _c(w_out), b_out)
    assert out_bf16.shape == ref.shape
    assert jnp.allclose(out_bf16, ref_bf16, atol=1e-1, rtol=1e-1), "bf16 path mismatch vs reference"

    print("KERNEL_OK")
</pallas_src>

<mosaic_0001>
module attributes {stable_mosaic.version = 11 : i64} {
  func.func @_mlp_kernel(%arg0: i32, %arg1: i32, %arg2: memref<16x128xf32, #tpu.memory_space<vmem>>, %arg3: memref<128x128xf32, #tpu.memory_space<vmem>>, %arg4: memref<1x128xf32, #tpu.memory_space<vmem>>, %arg5: memref<128x128xf32, #tpu.memory_space<vmem>>, %arg6: memref<1x128xf32, #tpu.memory_space<vmem>>, %arg7: memref<16x128xf32, #tpu.memory_space<vmem>>, %arg8: memref<16x128xf32, #tpu.memory_space<vmem>>) attributes {dimension_semantics = [#tpu.dimension_semantics<parallel>, #tpu.dimension_semantics<arbitrary>], iteration_bounds = array<i64: 1, 1>, scalar_prefetch = 0 : i64, scratch_operands = 1 : i64, tpu.core_type = #tpu.core_type<tc>, window_params = [{transform_indices = @transform_0, window_bounds = array<i64: 16, 128>}, {transform_indices = @transform_1, window_bounds = array<i64: 128, 128>}, {transform_indices = @transform_2, window_bounds = array<i64: 1, 128>}, {transform_indices = @transform_3, window_bounds = array<i64: 128, 128>}, {pipeline_mode = #tpu.pipeline_mode<synchronous>, transform_indices = @transform_4, window_bounds = array<i64: 1, 128>}, {transform_indices = @transform_5, window_bounds = array<i64: 16, 128>}]} {
    %c0_i32 = arith.constant 0 : i32
    %0 = arith.cmpi eq, %arg1, %c0_i32 : i32
    %1 = arith.extui %0 : i1 to i32
    %c0_i32_0 = arith.constant 0 : i32
    %2 = arith.cmpi ne, %1, %c0_i32_0 : i32
    scf.if %2 {
      %cst_17 = arith.constant 0.000000e+00 : f32
      %24 = vector.broadcast %cst_17 : f32 to vector<16x128xf32>
      %c0_18 = arith.constant 0 : index
      %c0_19 = arith.constant 0 : index
      %25 = vector.load %arg8[%c0_18, %c0_19] : memref<16x128xf32, #tpu.memory_space<vmem>>, vector<16x128xf32>
      tpu.vector_store %arg8[%c0_18, %c0_19], %24 {strides = array<i32>} : memref<16x128xf32, #tpu.memory_space<vmem>>, vector<16x128xf32>,
    } else {
    }
    %c0 = arith.constant 0 : index
    %c0_1 = arith.constant 0 : index
    %3 = vector.load %arg2[%c0, %c0_1] : memref<16x128xf32, #tpu.memory_space<vmem>>, vector<16x128xf32>
    %c0_2 = arith.constant 0 : index
    %c0_3 = arith.constant 0 : index
    %4 = vector.load %arg3[%c0_2, %c0_3] : memref<128x128xf32, #tpu.memory_space<vmem>>, vector<128x128xf32>
    %cst = arith.constant dense<0.000000e+00> : vector<16x128xf32>
    %5 = tpu.matmul %3, %4, %cst {dimension_numbers = #tpu.dot_dimension_numbers<[1], [0], [0], [1], [0, 0, 1, 1], [], []>} : vector<16x128xf32>, vector<128x128xf32>, vector<16x128xf32> -> vector<16x128xf32>
    %c0_4 = arith.constant 0 : index
    %c0_5 = arith.constant 0 : index
    %6 = vector.load %arg4[%c0_4, %c0_5] : memref<1x128xf32, #tpu.memory_space<vmem>>, vector<1x128xf32>
    %7 = vector.broadcast %6 : vector<1x128xf32> to vector<16x128xf32>
    %8 = arith.addf %5, %7 : vector<16x128xf32>
    %cst_6 = arith.constant -1.702000e+00 : f32
    %9 = vector.broadcast %cst_6 : f32 to vector<16x128xf32>
    %10 = arith.mulf %9, %8 : vector<16x128xf32>
    %11 = math.exp %10 : vector<16x128xf32>
    %cst_7 = arith.constant 1.000000e+00 : f32
    %12 = vector.broadcast %cst_7 : f32 to vector<16x128xf32>
    %13 = arith.addf %12, %11 : vector<16x128xf32>
    %14 = tpu.reciprocal %13 {approx = true} : vector<16x128xf32> -> vector<16x128xf32>
    %15 = arith.mulf %8, %14 : vector<16x128xf32>
    %c0_8 = arith.constant 0 : index
    %c0_9 = arith.constant 0 : index
    %16 = vector.load %arg8[%c0_8, %c0_9] : memref<16x128xf32, #tpu.memory_space<vmem>>, vector<16x128xf32>
    %c0_10 = arith.constant 0 : index
    %c0_11 = arith.constant 0 : index
    %17 = vector.load %arg5[%c0_10, %c0_11] : memref<128x128xf32, #tpu.memory_space<vmem>>, vector<128x128xf32>
    %cst_12 = arith.constant dense<0.000000e+00> : vector<16x128xf32>
    %18 = tpu.matmul %15, %17, %cst_12 {dimension_numbers = #tpu.dot_dimension_numbers<[1], [0], [0], [1], [0, 0, 1, 1], [], []>} : vector<16x128xf32>, vector<128x128xf32>, vector<16x128xf32> -> vector<16x128xf32>
    %19 = arith.addf %16, %18 : vector<16x128xf32>
    %c0_13 = arith.constant 0 : index
    %c0_14 = arith.constant 0 : index
    %20 = vector.load %arg8[%c0_13, %c0_14] : memref<16x128xf32, #tpu.memory_space<vmem>>, vector<16x128xf32>
    tpu.vector_store %arg8[%c0_13, %c0_14], %19 {strides = array<i32>} : memref<16x128xf32, #tpu.memory_space<vmem>>, vector<16x128xf32>,
    %c0_i32_15 = arith.constant 0 : i32
    %21 = arith.cmpi eq, %arg1, %c0_i32_15 : i32
    %22 = arith.extui %21 : i1 to i32
    %c0_i32_16 = arith.constant 0 : i32
    %23 = arith.cmpi ne, %22, %c0_i32_16 : i32
    scf.if %23 {
      %c0_17 = arith.constant 0 : index
      %c0_18 = arith.constant 0 : index
      %24 = vector.load %arg8[%c0_17, %c0_18] : memref<16x128xf32, #tpu.memory_space<vmem>>, vector<16x128xf32>
      %c0_19 = arith.constant 0 : index
      %c0_20 = arith.constant 0 : index
      %25 = vector.load %arg6[%c0_19, %c0_20] : memref<1x128xf32, #tpu.memory_space<vmem>>, vector<1x128xf32>
      %26 = vector.broadcast %25 : vector<1x128xf32> to vector<16x128xf32>
      %27 = arith.addf %24, %26 : vector<16x128xf32>
      %c0_21 = arith.constant 0 : index
      %c0_22 = arith.constant 0 : index
      %28 = vector.load %arg7[%c0_21, %c0_22] : memref<16x128xf32, #tpu.memory_space<vmem>>, vector<16x128xf32>
      tpu.vector_store %arg7[%c0_21, %c0_22], %27 {strides = array<i32>} : memref<16x128xf32, #tpu.memory_space<vmem>>, vector<16x128xf32>,
    } else {
    }
    return
  }
  func.func @transform_0(%arg0: i32, %arg1: i32) -> (i32, i32) {
    %c0_i32 = arith.constant 0 : i32
    %c0_i32_0 = arith.constant 0 : i32
    return %arg0, %c0_i32 : i32, i32
  }
  func.func @transform_1(%arg0: i32, %arg1: i32) -> (i32, i32) {
    %c0_i32 = arith.constant 0 : i32
    %c0_i32_0 = arith.constant 0 : i32
    return %c0_i32, %arg1 : i32, i32
  }
  func.func @transform_2(%arg0: i32, %arg1: i32) -> (i32, i32) {
    %c0_i32 = arith.constant 0 : i32
    %c0_i32_0 = arith.constant 0 : i32
    return %c0_i32, %arg1 : i32, i32
  }
  func.func @transform_3(%arg0: i32, %arg1: i32) -> (i32, i32) {
    %c0_i32 = arith.constant 0 : i32
    %c0_i32_0 = arith.constant 0 : i32
    return %arg1, %c0_i32 : i32, i32
  }
  func.func @transform_4(%arg0: i32, %arg1: i32) -> (i32, i32) {
    %c0_i32 = arith.constant 0 : i32
    %c0_i32_0 = arith.constant 0 : i32
    %c0_i32_1 = arith.constant 0 : i32
    return %c0_i32, %c0_i32_0 : i32, i32
  }
  func.func @transform_5(%arg0: i32, %arg1: i32) -> (i32, i32) {
    %c0_i32 = arith.constant 0 : i32
    %c0_i32_0 = arith.constant 0 : i32
    return %arg0, %c0_i32 : i32, i32
  }
}

</mosaic_0001>

<llo_original>
// kernel: tpu_custom_call.1
$region0: #{tpu_custom_call.1}
  #allocation0 [shape = 'u32[]', space=smem, size = 0x4, offset = 0x4, fixed_abs, tag = 'smem constant byte address 0x4 - core index']
  #allocation1 [shape = 'u32[144,128]{1,0:T(1,128)}', space=vmem, size = 0x12000, scoped, tag = 'internal scratch']
  #allocation2 [shape = 'f32[16,128]{1,0:T(8,128)}', space=vmem, size = 0x2000, scoped, tag = 'scratch operand']
  %s0 = inlined_call_operand.hbm [shape: f32[16,128], index: 0, kind: input, shape index: {}]
  %s1 = inlined_call_operand.hbm [shape: f32[128,128], index: 1, kind: input, shape index: {}]
  %s2 = inlined_call_operand.vmem [shape: f32[1,128], index: 2, kind: input, shape index: {}]
  %s3 = inlined_call_operand.hbm [shape: f32[128,128], index: 3, kind: input, shape index: {}]
  %s4 = inlined_call_operand.vmem [shape: f32[1,128], index: 4, kind: input, shape index: {}]
  %s5 = inlined_call_operand.hbm [shape: f32[16,128], index: 5, kind: output, shape index: {}]
  %s6 = sld [smem:[#allocation0]]
  $region50: #{tpu_custom_call.1} parent=0
    _
  %s8 = ssub.s32 1, %s6
  %s9 = scalar_select 0, %s8, %s6
  $region1: #{tpu_custom_call.1} parent=0
    #allocation3 [shape = 'u8[8192]{0}', space=vmem, size = 0x2000, scoped, tag = 'input window, operand 0, single buffered']
    #allocation4 [shape = 's32[1]{0}', space=sflag, size = 0x4, scoped, tag = 'scoped memory for tpu_custom_call.1']
    #allocation5 [shape = 's32[1]{0}', space=sflag, size = 0x4, scoped, tag = 'scoped memory for tpu_custom_call.1']
    #allocation6 [shape = 'u8[65536]{0}', space=vmem, size = 0x10000, scoped, tag = 'input window, operand 1, single buffered']
    #allocation7 [shape = 's32[1]{0}', space=sflag, size = 0x4, scoped, tag = 'scoped memory for tpu_custom_call.1']
    #allocation8 [shape = 'u8[65536]{0}', space=vmem, size = 0x10000, scoped, tag = 'input window, operand 3, single buffered']
    #allocation9 [shape = 'u8[8192]{0}', space=vmem, size = 0x2000, scoped, tag = 'output window, operand 0, single buffered']
    %10 = vsyncpa [#allocation4], 0
    %11 = vsyncpa [#allocation7], 0
    %12 = vsyncpa [#allocation5], 0
    // Predicated region
    $region2: #{tpu_custom_call.1} parent=1 // pred_check
      _
    $region3: #{tpu_custom_call.1} parent=1 // pred_check_branch
      %14 = sbr.rel (0) target = $region5
    $region4: #{tpu_custom_call.1} parent=1 // pred_region
      %s16 = ssub.s32 256, 256
      %17 = vsyncadd [#allocation4], %s16
      %s18 = sshll.u32 [#allocation3], 4
      %s19 = int_to_ptr.vmem [resolvable:$true] %s18
      %24 = dma.hbm_to_vmem [thread:$0]  %s0, 256, %s19, [#allocation4], 128, 128, 8
    $region5: #{tpu_custom_call.1} parent=1 // pred_fallthru
      _
    // Predicated region
    $region6: #{tpu_custom_call.1} parent=1 // pred_check
      _
    $region7: #{tpu_custom_call.1} parent=1 // pred_check_branch
      %26 = sbr.rel (0) target = $region9
    $region8: #{tpu_custom_call.1} parent=1 // pred_region
      %s28 = ssub.s32 2048, 2048
      %29 = vsyncadd [#allocation7], %s28
      %s30 = sshll.u32 [#allocation6], 4
      %s31 = int_to_ptr.vmem [resolvable:$true] %s30
      %36 = dma.hbm_to_vmem [thread:$0]  %s1, 2048, %s31, [#allocation7], 128, 128, 8
    $region9: #{tpu_custom_call.1} parent=1 // pred_fallthru
      _
    // Predicated region
    $region10: #{tpu_custom_call.1} parent=1 // pred_check
      _
    $region11: #{tpu_custom_call.1} parent=1 // pred_check_branch
      %38 = sbr.rel (0) target = $region13
    $region12: #{tpu_custom_call.1} parent=1 // pred_region
      _
    $region13: #{tpu_custom_call.1} parent=1 // pred_fallthru
      _
    // Predicated region
    $region14: #{tpu_custom_call.1} parent=1 // pred_check
      _
    $region15: #{tpu_custom_call.1} parent=1 // pred_check_branch
      %40 = sbr.rel (0) target = $region17
    $region16: #{tpu_custom_call.1} parent=1 // pred_region
      %s42 = ssub.s32 2048, 2048
      %43 = vsyncadd [#allocation7], %s42
      %s44 = sshll.u32 [#allocation8], 4
      %s45 = int_to_ptr.vmem [resolvable:$true] %s44
      %50 = dma.hbm_to_vmem [thread:$0]  %s3, 2048, %s45, [#allocation7], 128, 128, 8
    $region17: #{tpu_custom_call.1} parent=1 // pred_fallthru
      _
    // Predicated region
    $region18: #{tpu_custom_call.1} parent=1 // pred_check
      _
    $region19: #{tpu_custom_call.1} parent=1 // pred_check_branch
      %52 = sbr.rel (0) target = $region21
    $region20: #{tpu_custom_call.1} parent=1 // pred_region
      _
    $region21: #{tpu_custom_call.1} parent=1 // pred_fallthru
      _
    // Predicated region
    $region22: #{tpu_custom_call.1} parent=1 // pred_check
      _
    $region23: #{tpu_custom_call.1} parent=1 // pred_check_branch
      %54 = sbr.rel (0) target = $region25
    $region24: #{tpu_custom_call.1} parent=1 // pred_region
      %55 = dma.done [#allocation4], 256
    $region25: #{tpu_custom_call.1} parent=1 // pred_fallthru
      _
    // Predicated region
    $region26: #{tpu_custom_call.1} parent=1 // pred_check
      _
    $region27: #{tpu_custom_call.1} parent=1 // pred_check_branch
      %57 = sbr.rel (0) target = $region29
    $region28: #{tpu_custom_call.1} parent=1 // pred_region
      %58 = dma.done [#allocation7], 2048
    $region29: #{tpu_custom_call.1} parent=1 // pred_fallthru
      _
    // Predicated region
    $region30: #{tpu_custom_call.1} parent=1 // pred_check
      _
    $region31: #{tpu_custom_call.1} parent=1 // pred_check_branch
      %60 = sbr.rel (0) target = $region33
    $region32: #{tpu_custom_call.1} parent=1 // pred_region
      %61 = dma.done [#allocation7], 2048
    $region33: #{tpu_custom_call.1} parent=1 // pred_fallthru
      _
    %p62 = scmp.eq.s32.totalorder 0, 0
    // Predicated region
    $region34: #{tpu_custom_call.1} parent=1 // pred_check
      %p63 = pneg %p62
    $region35: #{tpu_custom_call.1} parent=1 // pred_check_branch
      %65 = sbr.rel (%p63) target = $region37
    $region36: #{tpu_custom_call.1} parent=1 // pred_region
      %66 = vst [vmem:[#allocation2] sm:$0xff] 0.0
      %67 = vst [vmem:[#allocation2 + $0x8] sm:$0xff] 0.0
    $region37: #{tpu_custom_call.1} parent=1 // pred_fallthru
      _
    %v68 = vld [vmem:[#allocation3] sm:$0xff]
    %v69 = vld [vmem:[#allocation3 + $0x8] sm:$0xff]
    %v70 = vld [vmem:[#allocation6] sm:$0xff]
    %v71 = vld [vmem:[#allocation6 + $0x8] sm:$0xff]
    %v72 = vld [vmem:[#allocation6 + $0x10] sm:$0xff]
    %v73 = vld [vmem:[#allocation6 + $0x18] sm:$0xff]
    %v74 = vld [vmem:[#allocation6 + $0x20] sm:$0xff]
    %v75 = vld [vmem:[#allocation6 + $0x28] sm:$0xff]
    %v76 = vld [vmem:[#allocation6 + $0x30] sm:$0xff]
    %v77 = vld [vmem:[#allocation6 + $0x38] sm:$0xff]
    %v78 = vld [vmem:[#allocation6 + $0x40] sm:$0xff]
    %v79 = vld [vmem:[#allocation6 + $0x48] sm:$0xff]
    %v80 = vld [vmem:[#allocation6 + $0x50] sm:$0xff]
    %v81 = vld [vmem:[#allocation6 + $0x58] sm:$0xff]
    %v82 = vld [vmem:[#allocation6 + $0x60] sm:$0xff]
    %v83 = vld [vmem:[#allocation6 + $0x68] sm:$0xff]
    %v84 = vld [vmem:[#allocation6 + $0x70] sm:$0xff]
    %v85 = vld [vmem:[#allocation6 + $0x78] sm:$0xff]
    %v86 = vld [vmem:[%s2] sm:$0x1]
    %v88 = vlaneseq
    %v89 = vshrl.u32 %v88, 7
    %v90 = vsub.s32 0, %v89
    %v91 = vrot.slane %v86, %v90
    %93 = vmatprep.subr.mxu0 0.0
    %94 = vmatpush1.msra.mxu0 %v70
    %95 = vmatprep.subr.mxu0 0.0
    %96 = vmatpush1.msra.mxu0 %v71
    %97 = vmatprep.subr.mxu0 0.0
    %98 = vmatpush1.msra.mxu0 %v72
    %99 = vmatprep.subr.mxu0 0.0
    %100 = vmatpush1.msra.mxu0 %v73
    %101 = vmatprep.subr.mxu0 0.0
    %102 = vmatpush1.msra.mxu0 %v74
    %103 = vmatprep.subr.mxu0 0.0
    %104 = vmatpush1.msra.mxu0 %v75
    %105 = vmatprep.subr.mxu0 0.0
    %106 = vmatpush1.msra.mxu0 %v76
    %107 = vmatprep.subr.mxu0 0.0
    %108 = vmatpush1.msra.mxu0 %v77
    %109 = vmatprep.subr.mxu0 0.0
    %110 = vmatpush1.msra.mxu0 %v78
    %111 = vmatprep.subr.mxu0 0.0
    %112 = vmatpush1.msra.mxu0 %v79
    %113 = vmatprep.subr.mxu0 0.0
    %114 = vmatpush1.msra.mxu0 %v80
    %115 = vmatprep.subr.mxu0 0.0
    %116 = vmatpush1.msra.mxu0 %v81
    %117 = vmatprep.subr.mxu0 0.0
    %118 = vmatpush1.msra.mxu0 %v82
    %119 = vmatprep.subr.mxu0 0.0
    %120 = vmatpush1.msra.mxu0 %v83
    %121 = vmatprep.subr.mxu0 0.0
    %122 = vmatpush1.msra.mxu0 %v84
    %123 = vmatprep.subr.mxu0 0.0
    %124 = vmatpush1.msra.mxu0 %v85
    %125 = vmatprep.subr.mxu0 0.0
    %126 = vmatpush1.msra.mxu0 0.0
    %127 = vmatprep.subr.mxu0 0.0
    %128 = vmatpush1.msra.mxu0 0.0
    %129 = vmatprep.subr.mxu0 0.0
    %130 = vmatpush1.msra.mxu0 0.0
    %131 = vmatprep.subr.mxu0 0.0
    %132 = vmatpush1.msra.mxu0 0.0
    %133 = vmatprep.subr.mxu0 0.0
    %134 = vmatpush1.msra.mxu0 0.0
    %135 = vmatprep.subr.mxu0 0.0
    %136 = vmatpush1.msra.mxu0 0.0
    %137 = vmatprep.subr.mxu0 0.0
    %138 = vmatpush1.msra.mxu0 0.0
    %139 = vmatprep.subr.mxu0 0.0
    %140 = vmatpush1.msra.mxu0 0.0
    %141 = vmatprep.subr.mxu0 0.0
    %142 = vmatpush1.msra.mxu0 0.0
    %143 = vmatprep.subr.mxu0 0.0
    %144 = vmatpush1.msra.mxu0 0.0
    %145 = vmatprep.subr.mxu0 0.0
    %146 = vmatpush1.msra.mxu0 0.0
    %147 = vmatprep.subr.mxu0 0.0
    %148 = vmatpush1.msra.mxu0 0.0
    %149 = vmatprep.subr.mxu0 0.0
    %150 = vmatpush1.msra.mxu0 0.0
    %151 = vmatprep.subr.mxu0 0.0
    %152 = vmatpush1.msra.mxu0 0.0
    %153 = vmatprep.subr.mxu0 0.0
    %154 = vmatpush1.msra.mxu0 0.0
    %155 = vmatprep.subr.mxu0 0.0
    %156 = vmatpush1.msra.mxu0 0.0
    %157 = vmatprep.mubr.f32.mxu0 0.0
    %158 = vmatmul.mubr.f32.gmra.mrb[0].mxu0 %v68
    %v159 = vpop.f32.mrb[0].mxu0
    %v160 = vadd.f32 %v91, %v159
    %v161 = vpop.f32.mrb[0].mxu0
    %162 = vmatprep.mubr.f32.mxu0 0.0
    %163 = vmatmul.mubr.f32.gmra.mrb[0].mxu0 %v69
    %v164 = vpop.f32.mrb[0].mxu0
    %v165 = vadd.f32 %v91, %v164
    %v166 = vpop.f32.mrb[0].mxu0
    %167 = vdwg.mxu0
    %v168 = vmul.f32 %v160, -1.702
    %v169 = vmul.f32 %v165, -1.702
    %v170 = vmul.f32 %v168, 1.442695
    %v171 = vpow.pop %v170
    %v172 = vmul.f32 %v169, 1.442695
    %v173 = vpow.pop %v172
    %v174 = vadd.f32 %v171, 1.0
    %v175 = vadd.f32 %v173, 1.0
    %v176 = vrcp.pop %v174
    %v177 = vrcp.pop %v175
    %v178 = vmul.f32 %v160, %v176
    %v179 = vmul.f32 %v165, %v177
    %v180 = vld [vmem:[#allocation2] sm:$0xff]
    %v181 = vld [vmem:[#allocation2 + $0x8] sm:$0xff]
    %v182 = vld [vmem:[#allocation8] sm:$0xff]
    %v183 = vld [vmem:[#allocation8 + $0x8] sm:$0xff]
    %v184 = vld [vmem:[#allocation8 + $0x10] sm:$0xff]
    %v185 = vld [vmem:[#allocation8 + $0x18] sm:$0xff]
    %v186 = vld [vmem:[#allocation8 + $0x20] sm:$0xff]
    %v187 = vld [vmem:[#allocation8 + $0x28] sm:$0xff]
    %v188 = vld [vmem:[#allocation8 + $0x30] sm:$0xff]
    %v189 = vld [vmem:[#allocation8 + $0x38] sm:$0xff]
    %v190 = vld [vmem:[#allocation8 + $0x40] sm:$0xff]
    %v191 = vld [vmem:[#allocation8 + $0x48] sm:$0xff]
    %v192 = vld [vmem:[#allocation8 + $0x50] sm:$0xff]
    %v193 = vld [vmem:[#allocation8 + $0x58] sm:$0xff]
    %v194 = vld [vmem:[#allocation8 + $0x60] sm:$0xff]
    %v195 = vld [vmem:[#allocation8 + $0x68] sm:$0xff]
    %v196 = vld [vmem:[#allocation8 + $0x70] sm:$0xff]
    %v197 = vld [vmem:[#allocation8 + $0x78] sm:$0xff]
    %198 = vmatprep.subr.mxu0 0.0
    %199 = vmatpush1.msra.mxu0 %v182
    %200 = vmatprep.subr.mxu0 0.0
    %201 = vmatpush1.msra.mxu0 %v183
    %202 = vmatprep.subr.mxu0 0.0
    %203 = vmatpush1.msra.mxu0 %v184
    %204 = vmatprep.subr.mxu0 0.0
    %205 = vmatpush1.msra.mxu0 %v185
    %206 = vmatprep.subr.mxu0 0.0
    %207 = vmatpush1.msra.mxu0 %v186
    %208 = vmatprep.subr.mxu0 0.0
    %209 = vmatpush1.msra.mxu0 %v187
    %210 = vmatprep.subr.mxu0 0.0
    %211 = vmatpush1.msra.mxu0 %v188
    %212 = vmatprep.subr.mxu0 0.0
    %213 = vmatpush1.msra.mxu0 %v189
    %214 = vmatprep.subr.mxu0 0.0
    %215 = vmatpush1.msra.mxu0 %v190
    %216 = vmatprep.subr.mxu0 0.0
    %217 = vmatpush1.msra.mxu0 %v191
    %218 = vmatprep.subr.mxu0 0.0
    %219 = vmatpush1.msra.mxu0 %v192
    %220 = vmatprep.subr.mxu0 0.0
    %221 = vmatpush1.msra.mxu0 %v193
    %222 = vmatprep.subr.mxu0 0.0
    %223 = vmatpush1.msra.mxu0 %v194
    %224 = vmatprep.subr.mxu0 0.0
    %225 = vmatpush1.msra.mxu0 %v195
    %226 = vmatprep.subr.mxu0 0.0
    %227 = vmatpush1.msra.mxu0 %v196
    %228 = vmatprep.subr.mxu0 0.0
    %229 = vmatpush1.msra.mxu0 %v197
    %230 = vmatprep.subr.mxu0 0.0
    %231 = vmatpush1.msra.mxu0 0.0
    %232 = vmatprep.subr.mxu0 0.0
    %233 = vmatpush1.msra.mxu0 0.0
    %234 = vmatprep.subr.mxu0 0.0
    %235 = vmatpush1.msra.mxu0 0.0
    %236 = vmatprep.subr.mxu0 0.0
    %237 = vmatpush1.msra.mxu0 0.0
    %238 = vmatprep.subr.mxu0 0.0
    %239 = vmatpush1.msra.mxu0 0.0
    %240 = vmatprep.subr.mxu0 0.0
    %241 = vmatpush1.msra.mxu0 0.0
    %242 = vmatprep.subr.mxu0 0.0
    %243 = vmatpush1.msra.mxu0 0.0
    %244 = vmatprep.subr.mxu0 0.0
    %245 = vmatpush1.msra.mxu0 0.0
    %246 = vmatprep.subr.mxu0 0.0
    %247 = vmatpush1.msra.mxu0 0.0
    %248 = vmatprep.subr.mxu0 0.0
    %249 = vmatpush1.msra.mxu0 0.0
    %250 = vmatprep.subr.mxu0 0.0
    %251 = vmatpush1.msra.mxu0 0.0
    %252 = vmatprep.subr.mxu0 0.0
    %253 = vmatpush1.msra.mxu0 0.0
    %254 = vmatprep.subr.mxu0 0.0
    %255 = vmatpush1.msra.mxu0 0.0
    %256 = vmatprep.subr.mxu0 0.0
    %257 = vmatpush1.msra.mxu0 0.0
    %258 = vmatprep.subr.mxu0 0.0
    %259 = vmatpush1.msra.mxu0 0.0
    %260 = vmatprep.subr.mxu0 0.0
    %261 = vmatpush1.msra.mxu0 0.0
    %262 = vmatprep.mubr.f32.mxu0 0.0
    %263 = vmatmul.mubr.f32.gmra.mrb[0].mxu0 %v178
    %v264 = vpop.f32.mrb[0].mxu0
    %v265 = vadd.f32 0.0, %v264
    %v266 = vpop.f32.mrb[0].mxu0
    %267 = vmatprep.mubr.f32.mxu0 0.0
    %268 = vmatmul.mubr.f32.gmra.mrb[0].mxu0 %v179
    %v269 = vpop.f32.mrb[0].mxu0
    %v270 = vadd.f32 0.0, %v269
    %v271 = vpop.f32.mrb[0].mxu0
    %272 = vdwg.mxu0
    %v273 = vadd.f32 %v180, %v265
    %v274 = vadd.f32 %v181, %v270
    %275 = vst [vmem:[#allocation2] sm:$0xff] %v273
    %276 = vst [vmem:[#allocation2 + $0x8] sm:$0xff] %v274
    // Predicated region
    $region38: #{tpu_custom_call.1} parent=1 // pred_check
      %p277 = pneg %p62
    $region39: #{tpu_custom_call.1} parent=1 // pred_check_branch
      %279 = sbr.rel (%p277) target = $region41
    $region40: #{tpu_custom_call.1} parent=1 // pred_region
      %v280 = vld [vmem:[#allocation2] sm:$0xff]
      %v281 = vld [vmem:[#allocation2 + $0x8] sm:$0xff]
      %v282 = vld [vmem:[%s4] sm:$0x1]
      %v284 = vlaneseq
      %v285 = vshrl.u32 %v284, 7
      %v286 = vsub.s32 0, %v285
      %v287 = vrot.slane %v282, %v286
      %v289 = vadd.f32 %v280, %v287
      %v290 = vadd.f32 %v281, %v287
      %291 = vst [vmem:[#allocation9] sm:$0xff] %v289
      %292 = vst [vmem:[#allocation9 + $0x8] sm:$0xff] %v290
    $region41: #{tpu_custom_call.1} parent=1 // pred_fallthru
      _
    // Predicated region
    $region42: #{tpu_custom_call.1} parent=1 // pred_check
      _
    $region43: #{tpu_custom_call.1} parent=1 // pred_check_branch
      %294 = sbr.rel (0) target = $region45
    $region44: #{tpu_custom_call.1} parent=1 // pred_region
      %s296 = ssub.s32 256, 256
      %297 = vsyncadd [#allocation5], %s296
      %s298 = sshll.u32 [#allocation9], 4
      %s299 = int_to_ptr.vmem [resolvable:$true] %s298
      %304 = dma.vmem_to_hbm [thread:$0]  %s299, 256, %s5, [#allocation5], 128, 128, 8
    $region45: #{tpu_custom_call.1} parent=1 // pred_fallthru
      _
    // Predicated region
    $region46: #{tpu_custom_call.1} parent=1 // pred_check
      _
    $region47: #{tpu_custom_call.1} parent=1 // pred_check_branch
      %306 = sbr.rel (0) target = $region49
    $region48: #{tpu_custom_call.1} parent=1 // pred_region
      %307 = dma.done [#allocation5], 256
    $region49: #{tpu_custom_call.1} parent=1 // pred_fallthru
      _
    %308 = vsyncpa [#allocation4], 1
    %309 = vsyncpa [#allocation7], 1
    %310 = vsyncpa [#allocation5], 1

</llo_original>
